<compile_context>
chip_gen: v7x
topology: tpu7x:2x2x1
jax: 0.10.0
libtpu: 0.0.40
codegen_flags: <defaults>
</compile_context>

<pallas_src>
import functools

import jax
import jax.numpy as jnp
from jax.experimental import pallas as pl
from jax.experimental.pallas import tpu as pltpu


def _round_up(n, m):
    return ((n + m - 1) // m) * m


def _pick_tile(hw):
    # Largest lane-aligned (multiple-of-128) tile dividing HW; full extent as
    # a fallback for small inputs.
    for t in (512, 256, 128):
        if hw % t == 0:
            return t
    return hw


def _spec(shape):
    n = len(shape)
    return pl.BlockSpec(shape, lambda *_: (0,) * n)


# ----------------------------------------------------------------------------
# Kernel 1: fused ALD gate + 1x1-conv stem + ReLU + global average pool
#           (+ per-sample ALD result head when gated)
# ----------------------------------------------------------------------------
def _fused_stem_pool_kernel(*refs, inv_hw, gated):
    if gated:
        (x_ref, scale_ref, wt_ref, bt_ref, wres_ref,
         feat_ref, res_ref, facc, yacc) = refs
    else:
        x_ref, wt_ref, bt_ref, feat_ref, facc = refs
        scale_ref = wres_ref = res_ref = yacc = None

    k = pl.program_id(1)

    @pl.when(k == 0)
    def _init():
        facc[...] = jnp.zeros_like(facc)
        if gated:
            yacc[...] = jnp.zeros_like(yacc)

    x = x_ref[...]                                   # (1, C, T), HW on lanes
    if gated:
        gate = jax.nn.sigmoid(scale_ref[...])        # (1, C, 1) per-sample gate
        y = x * gate                                 # lane-broadcast multiply
        yacc[...] += jnp.sum(y, axis=2, keepdims=True)
    else:
        y = x

    _, ch, _ = x_ref.shape
    wt = wt_ref[...]                                 # (F, C), hoisted load
    # 1x1-conv stem on the VPU: static unroll over the tiny channel count.
    feat = y[:, 0:1, :] * wt[:, 0:1][None, :, :]                 # (1, F, T)
    for c in range(1, ch):
        feat = feat + y[:, c:c + 1, :] * wt[:, c:c + 1][None, :, :]
    feat = jnp.maximum(feat + bt_ref[...][None, :, :], 0.0)      # bias + ReLU
    facc[...] += jnp.sum(feat, axis=2, keepdims=True)            # partial sums

    @pl.when(k == pl.num_programs(1) - 1)
    def _finalize():
        feat_ref[...] = facc[...] * inv_hw                       # single store
        if gated:
            py = yacc[...] * inv_hw                              # (1, C, 1)
            wres = wres_ref[...][None, :, :]                     # (1, C, Rp)
            # ALD result head: C broadcast MACs -> one lane-dense store.
            acc = py[:, 0:1, :] * wres[:, 0:1, :]                # (1, 1, Rp)
            for c in range(1, ch):
                acc = acc + py[:, c:c + 1, :] * wres[:, c:c + 1, :]
            res_ref[...] = acc


def _fused_stem_pool(x3, scale, w_stem_t, b_stem_t, w_res_p, *, gated):
    B, C, HW = x3.shape
    F = w_stem_t.shape[0]
    T = _pick_tile(HW)
    grid = (B, HW // T)
    kernel = functools.partial(_fused_stem_pool_kernel,
                               inv_hw=1.0 / HW, gated=gated)

    x_spec = pl.BlockSpec((1, C, T), lambda b, k: (b, 0, k))
    w_spec = pl.BlockSpec((F, C), lambda b, k: (0, 0))
    b_spec = pl.BlockSpec((F, 1), lambda b, k: (0, 0))
    feat_spec = pl.BlockSpec((1, F, 1), lambda b, k: (b, 0, 0))
    cparams = pltpu.CompilerParams(
        dimension_semantics=("parallel", "arbitrary"))
    facc = pltpu.VMEM((1, F, 1), jnp.float32)

    if gated:
        scale3 = scale.reshape(B, C, 1)
        Rp = w_res_p.shape[1]
        s_spec = pl.BlockSpec((1, C, 1), lambda b, k: (b, 0, 0))
        wr_spec = pl.BlockSpec((C, Rp), lambda b, k: (0, 0))
        res_spec = pl.BlockSpec((1, 1, Rp), lambda b, k: (b, 0, 0))
        feat, res = pl.pallas_call(
            kernel,
            grid=grid,
            in_specs=[x_spec, s_spec, w_spec, b_spec, wr_spec],
            out_specs=(feat_spec, res_spec),
            out_shape=(jax.ShapeDtypeStruct((B, F, 1), jnp.float32),
                       jax.ShapeDtypeStruct((B, 1, Rp), jnp.float32)),
            scratch_shapes=[facc, pltpu.VMEM((1, C, 1), jnp.float32)],
            compiler_params=cparams,
        )(x3, scale3, w_stem_t, b_stem_t, w_res_p)
        return feat[:, :, 0], res[:, 0, :]

    feat = pl.pallas_call(
        kernel,
        grid=grid,
        in_specs=[x_spec, w_spec, b_spec],
        out_specs=feat_spec,
        out_shape=jax.ShapeDtypeStruct((B, F, 1), jnp.float32),
        scratch_shapes=[facc],
        compiler_params=cparams,
    )(x3, w_stem_t, b_stem_t)
    return feat[:, :, 0], None


# ----------------------------------------------------------------------------
# Kernel 2: classifier heads (packed, 128-padded, bf16 MXU matmuls)
# ----------------------------------------------------------------------------
def _heads_kernel(pool_ref, pp_ref, wb_ref, bb_ref, out_ref):
    pooled = pool_ref[...].astype(pp_ref.dtype)
    hidden = jnp.dot(pooled, pp_ref[...], preferred_element_type=jnp.float32)
    hidden = jnp.maximum(hidden, 0.0).astype(wb_ref.dtype)
    out_ref[...] = (jnp.dot(hidden, wb_ref[...],
                            preferred_element_type=jnp.float32) + bb_ref[...])


def _heads(pooled, p_packed, w_big, b_big):
    B, F = pooled.shape
    N4 = w_big.shape[1]
    return pl.pallas_call(
        _heads_kernel,
        out_shape=jax.ShapeDtypeStruct((B, N4), jnp.float32),
        in_specs=[_spec((B, F)), _spec(tuple(p_packed.shape)),
                  _spec(tuple(w_big.shape)), _spec(tuple(b_big.shape))],
        out_specs=_spec((B, N4)),
    )(pooled, p_packed, w_big, b_big)


# ----------------------------------------------------------------------------
# Parameters
# ----------------------------------------------------------------------------
def init_raw_params(key, *, num_train, in_ch, feat, num_classes):
    ks = jax.random.split(key, 16)
    n = lambda k, s, sc=0.1: (sc * jax.random.normal(k, s)).astype(jnp.float32)
    return {
        # ALD layers (per-train-sample gating rows + result heads)
        "ald1_scale": n(ks[0], (num_train, in_ch), 1.0),
        "ald1_wc": n(ks[1], (in_ch, num_train)),
        "ald2_scale": n(ks[2], (num_train, in_ch), 1.0),
        "ald2_w": n(ks[3], (in_ch, num_train)),
        "ald3_scale": n(ks[4], (num_train, in_ch), 1.0),
        "ald3_w": n(ks[5], (in_ch, num_train)),
        # backbone surrogate (1x1 conv stem + three classifier branches)
        "w_stem": n(ks[6], (in_ch, feat)),
        "b_stem": jnp.zeros((1, feat), jnp.float32),
        "p1": n(ks[7], (feat, feat)),
        "p2": n(ks[8], (feat, feat)),
        "p3": n(ks[9], (feat, feat)),
        "w1": n(ks[10], (feat, num_classes)),
        "b1": jnp.zeros((1, num_classes), jnp.float32),
        "w2": n(ks[11], (feat, num_classes)),
        "b2": jnp.zeros((1, num_classes), jnp.float32),
        "w3": n(ks[12], (feat, num_classes)),
        "b3": jnp.zeros((1, num_classes), jnp.float32),
        "wc1": n(ks[13], (feat, num_classes)),
        "wc2": n(ks[14], (feat, num_classes)),
        "wc3": n(ks[15], (feat, num_classes)),
        "bc": jnp.zeros((1, num_classes), jnp.float32),
    }


def pack_params(raw, *, num_train, num_classes):
    """One-time re-layout: transpose / 128-pad / pack weights into lane-dense
    kernel shapes.  Matmul weights go to bf16 (f32 accumulation in-kernel);
    the VPU stem path stays f32."""
    C, F = raw["w_stem"].shape
    NCp = _round_up(num_classes, 128)
    Rp = _round_up(num_train, 128)

    def pad_cols(w, n):
        return jnp.pad(w, ((0, 0), (0, n - w.shape[1])))

    zeros = jnp.zeros((F, NCp), jnp.float32)
    w1p, w2p, w3p = (pad_cols(raw[k], NCp) for k in ("w1", "w2", "w3"))
    wc1p, wc2p, wc3p = (pad_cols(raw[k], NCp) for k in ("wc1", "wc2", "wc3"))
    # Block matrix so [xc1 | xc2 | xc3 | x_concat] comes out of ONE matmul.
    w_big = jnp.concatenate([
        jnp.concatenate([w1p, zeros, zeros, wc1p], axis=1),
        jnp.concatenate([zeros, w2p, zeros, wc2p], axis=1),
        jnp.concatenate([zeros, zeros, w3p, wc3p], axis=1),
    ], axis=0)
    b_big = jnp.concatenate(
        [pad_cols(raw["b1"], NCp), pad_cols(raw["b2"], NCp),
         pad_cols(raw["b3"], NCp), pad_cols(raw["bc"], NCp)], axis=1)

    return {
        "num_train": num_train, "num_classes": num_classes, "ncp": NCp,
        # fused gate + stem + pool kernel (f32 VPU path)
        "w_stem_t": raw["w_stem"].T,                   # (F, C)
        "b_stem_t": raw["b_stem"].T,                   # (F, 1)
        # ALD gating rows + 128-padded result-head weights
        "ald1_scale": raw["ald1_scale"],
        "ald2_scale": raw["ald2_scale"],
        "ald3_scale": raw["ald3_scale"],
        "ald1_wc_p": pad_cols(raw["ald1_wc"], Rp),     # (C, Rp)
        "ald2_w_p": pad_cols(raw["ald2_w"], Rp),
        "ald3_w_p": pad_cols(raw["ald3_w"], Rp),
        # packed classifier heads (bf16 for the MXU)
        "p_packed": jnp.concatenate([raw["p1"], raw["p2"], raw["p3"]],
                                    axis=1).astype(jnp.bfloat16),  # (F, 3F)
        "w_big": w_big.astype(jnp.bfloat16),                       # (3F, 4*NCp)
        "b_big": b_big,                                            # (1, 4*NCp)
    }


# ----------------------------------------------------------------------------
# model4fev8_onlycentral_conti forward
# ----------------------------------------------------------------------------
def model4fev8_forward(pp, x, size, batch_seq, batchsize, train):
    del batchsize  # carried for signature parity with the PyTorch module
    B, C, H, W = x.shape
    x3 = x.reshape(B, C, H * W)     # NCHW flattened; H*W is the lane axis

    result = None
    gated = bool(train) and size in ("mul", "4", "2")
    if gated:
        if size == "mul":
            scale, w_res = pp["ald1_scale"][batch_seq], pp["ald1_wc_p"]
        elif size == "4":
            scale, w_res = pp["ald2_scale"][batch_seq], pp["ald2_w_p"]
        else:
            scale, w_res = pp["ald3_scale"][batch_seq], pp["ald3_w_p"]
        pooled_feat, result_p = _fused_stem_pool(
            x3, scale, pp["w_stem_t"], pp["b_stem_t"], w_res, gated=True)
        result = result_p[:, :pp["num_train"]]
    else:
        pooled_feat, _ = _fused_stem_pool(
            x3, None, pp["w_stem_t"], pp["b_stem_t"], None, gated=False)

    logits = _heads(pooled_feat, pp["p_packed"], pp["w_big"], pp["b_big"])
    NC, NCp = pp["num_classes"], pp["ncp"]
    xc1 = logits[:, 0 * NCp:0 * NCp + NC]
    xc2 = logits[:, 1 * NCp:1 * NCp + NC]
    xc3 = logits[:, 2 * NCp:2 * NCp + NC]
    x_concat = logits[:, 3 * NCp:3 * NCp + NC]

    if size == "original":
        return (xc1, xc2, xc3, x_concat)
    # 'mul' returns only the central result (onlycentral); '4'/'2' -> result.
    return (xc1, xc2, xc3, x_concat, result)


# ----------------------------------------------------------------------------
# Pure-JAX reference (mirrors the kernel math, incl. bf16 rounding of heads)
# ----------------------------------------------------------------------------
def _reference_forward(raw, x, size, batch_seq, train):
    B, C, H, W = x.shape
    F = raw["w_stem"].shape[1]
    bf = lambda a: a.astype(jnp.bfloat16).astype(jnp.float32)
    hi = jax.lax.Precision.HIGHEST

    result = None
    y = x
    if train and size in ("mul", "4", "2"):
        if size == "mul":
            scale, w_res = raw["ald1_scale"][batch_seq], raw["ald1_wc"]
        elif size == "4":
            scale, w_res = raw["ald2_scale"][batch_seq], raw["ald2_w"]
        else:
            scale, w_res = raw["ald3_scale"][batch_seq], raw["ald3_w"]
        y = x * jax.nn.sigmoid(scale)[:, :, None, None]
        result = jnp.dot(jnp.mean(y, axis=(2, 3)), w_res, precision=hi)

    ynhwc = jnp.transpose(y, (0, 2, 3, 1))
    feat = sum(ynhwc[..., c:c + 1] * raw["w_stem"][c] for c in range(C))
    feat = jnp.maximum(feat + raw["b_stem"][0], 0.0)
    pooled = bf(jnp.mean(feat, axis=(1, 2)))

    f1 = bf(jnp.maximum(jnp.dot(pooled, bf(raw["p1"]), precision=hi), 0.0))
    f2 = bf(jnp.maximum(jnp.dot(pooled, bf(raw["p2"]), precision=hi), 0.0))
    f3 = bf(jnp.maximum(jnp.dot(pooled, bf(raw["p3"]), precision=hi), 0.0))
    xc1 = jnp.dot(f1, bf(raw["w1"]), precision=hi) + raw["b1"]
    xc2 = jnp.dot(f2, bf(raw["w2"]), precision=hi) + raw["b2"]
    xc3 = jnp.dot(f3, bf(raw["w3"]), precision=hi) + raw["b3"]
    xcat = (jnp.dot(f1, bf(raw["wc1"]), precision=hi)
            + jnp.dot(f2, bf(raw["wc2"]), precision=hi)
            + jnp.dot(f3, bf(raw["wc3"]), precision=hi) + raw["bc"])
    if size == "original":
        return (xc1, xc2, xc3, xcat)
    return (xc1, xc2, xc3, xcat, result)


if __name__ == "__main__":
    B, C, H, W = 2, 3, 32, 32
    NUM_TRAIN, FEAT, NUM_CLASSES = 8, 32, 10

    key = jax.random.PRNGKey(0)
    kx, kp = jax.random.split(key)
    x = jax.random.normal(kx, (B, C, H, W), dtype=jnp.float32)
    batch_seq = jnp.array([0, 3], dtype=jnp.int32)

    raw = init_raw_params(kp, num_train=NUM_TRAIN, in_ch=C,
                          feat=FEAT, num_classes=NUM_CLASSES)
    params = pack_params(raw, num_train=NUM_TRAIN, num_classes=NUM_CLASSES)

    fwd = functools.partial(model4fev8_forward, params)
    ref = functools.partial(_reference_forward, raw)

    def check(out, expect, n_out):
        assert len(out) == n_out
        for o, e in zip(out, expect):
            if e is None:
                continue
            assert o.shape == e.shape, (o.shape, e.shape)
            err = float(jnp.max(jnp.abs(o - e)))
            assert err < 5e-2, err

    # train=True, size='mul' -> (xc1, xc2, xc3, x_concat, result_central)
    out_mul = fwd(x, "mul", batch_seq, B, True)
    jax.block_until_ready(out_mul)
    check(out_mul, ref(x, "mul", batch_seq, True), 5)
    assert out_mul[0].shape == (B, NUM_CLASSES)
    assert out_mul[4].shape == (B, NUM_TRAIN)

    # train=True, size='4' / '2' -> (xc1, xc2, xc3, x_concat, result)
    out_4 = fwd(x, "4", batch_seq, B, True)
    jax.block_until_ready(out_4)
    check(out_4, ref(x, "4", batch_seq, True), 5)

    out_2 = fwd(x, "2", batch_seq, B, True)
    jax.block_until_ready(out_2)
    check(out_2, ref(x, "2", batch_seq, True), 5)

    # size='original' -> (xc1, xc2, xc3, x_concat), gating skipped
    out_orig = fwd(x, "original", batch_seq, B, False)
    jax.block_until_ready(out_orig)
    check(out_orig, ref(x, "original", batch_seq, False), 4)

    print("KERNEL_OK")
</pallas_src>

<mosaic_0001>
module attributes {stable_mosaic.version = 11 : i64} {
  func.func @_fused_stem_pool_kernel(%arg0: i32, %arg1: i32, %arg2: memref<1x3x512xf32, #tpu.memory_space<vmem>>, %arg3: memref<1x3x1xf32, #tpu.memory_space<vmem>>, %arg4: memref<32x3xf32, #tpu.memory_space<vmem>>, %arg5: memref<32x1xf32, #tpu.memory_space<vmem>>, %arg6: memref<3x128xf32, #tpu.memory_space<vmem>>, %arg7: memref<1x32x1xf32, #tpu.memory_space<vmem>>, %arg8: memref<1x1x128xf32, #tpu.memory_space<vmem>>, %arg9: memref<1x32x1xf32, #tpu.memory_space<vmem>>, %arg10: memref<1x3x1xf32, #tpu.memory_space<vmem>>) attributes {dimension_semantics = [#tpu.dimension_semantics<parallel>, #tpu.dimension_semantics<arbitrary>], iteration_bounds = array<i64: 2, 2>, scalar_prefetch = 0 : i64, scratch_operands = 2 : i64, tpu.core_type = #tpu.core_type<tc>, window_params = [{transform_indices = @transform_0, window_bounds = array<i64: 1, 3, 512>}, {transform_indices = @transform_1, window_bounds = array<i64: 1, 3, 1>}, {pipeline_mode = #tpu.pipeline_mode<synchronous>, transform_indices = @transform_2, window_bounds = array<i64: 32, 3>}, {pipeline_mode = #tpu.pipeline_mode<synchronous>, transform_indices = @transform_3, window_bounds = array<i64: 32, 1>}, {pipeline_mode = #tpu.pipeline_mode<synchronous>, transform_indices = @transform_4, window_bounds = array<i64: 3, 128>}, {transform_indices = @transform_5, window_bounds = array<i64: 1, 32, 1>}, {transform_indices = @transform_6, window_bounds = array<i64: 1, 1, 128>}]} {
    %c0_i32 = arith.constant 0 : i32
    %0 = arith.cmpi eq, %arg1, %c0_i32 : i32
    %1 = arith.extui %0 : i1 to i32
    %c0_i32_0 = arith.constant 0 : i32
    %2 = arith.cmpi ne, %1, %c0_i32_0 : i32
    scf.if %2 {
      %cst_26 = arith.constant 0.000000e+00 : f32
      %52 = vector.broadcast %cst_26 : f32 to vector<1x32x1xf32>
      %c0_27 = arith.constant 0 : index
      %c0_28 = arith.constant 0 : index
      %c0_29 = arith.constant 0 : index
      %53 = vector.load %arg9[%c0_27, %c0_28, %c0_29] : memref<1x32x1xf32, #tpu.memory_space<vmem>>, vector<1x32x1xf32>
      tpu.vector_store %arg9[%c0_27, %c0_28, %c0_29], %52 {strides = array<i32>} : memref<1x32x1xf32, #tpu.memory_space<vmem>>, vector<1x32x1xf32>,
      %cst_30 = arith.constant 0.000000e+00 : f32
      %54 = vector.broadcast %cst_30 : f32 to vector<1x3x1xf32>
      %c0_31 = arith.constant 0 : index
      %c0_32 = arith.constant 0 : index
      %c0_33 = arith.constant 0 : index
      %55 = vector.load %arg10[%c0_31, %c0_32, %c0_33] : memref<1x3x1xf32, #tpu.memory_space<vmem>>, vector<1x3x1xf32>
      tpu.vector_store %arg10[%c0_31, %c0_32, %c0_33], %54 {strides = array<i32>} : memref<1x3x1xf32, #tpu.memory_space<vmem>>, vector<1x3x1xf32>,
    } else {
    }
    %c0 = arith.constant 0 : index
    %c0_1 = arith.constant 0 : index
    %c0_2 = arith.constant 0 : index
    %3 = vector.load %arg2[%c0, %c0_1, %c0_2] : memref<1x3x512xf32, #tpu.memory_space<vmem>>, vector<1x3x512xf32>
    %c0_3 = arith.constant 0 : index
    %c0_4 = arith.constant 0 : index
    %c0_5 = arith.constant 0 : index
    %4 = vector.load %arg3[%c0_3, %c0_4, %c0_5] : memref<1x3x1xf32, #tpu.memory_space<vmem>>, vector<1x3x1xf32>
    %5 = arith.negf %4 : vector<1x3x1xf32>
    %6 = math.exp %5 : vector<1x3x1xf32>
    %cst = arith.constant 1.000000e+00 : f32
    %7 = vector.broadcast %cst : f32 to vector<1x3x1xf32>
    %8 = arith.addf %7, %6 : vector<1x3x1xf32>
    %9 = arith.divf %7, %8 : vector<1x3x1xf32>
    %10 = vector.broadcast %9 : vector<1x3x1xf32> to vector<1x3x512xf32>
    %11 = arith.mulf %3, %10 : vector<1x3x512xf32>
    %c0_6 = arith.constant 0 : index
    %c0_7 = arith.constant 0 : index
    %c0_8 = arith.constant 0 : index
    %12 = vector.load %arg10[%c0_6, %c0_7, %c0_8] : memref<1x3x1xf32, #tpu.memory_space<vmem>>, vector<1x3x1xf32>
    %cst_9 = arith.constant dense<0.000000e+00> : vector<1x3xf32>
    %13 = vector.multi_reduction <add>, %11, %cst_9 [2] : vector<1x3x512xf32> to vector<1x3xf32>
    %14 = vector.shape_cast %13 : vector<1x3xf32> to vector<1x3x1xf32>
    %15 = arith.addf %12, %14 : vector<1x3x1xf32>
    %c0_10 = arith.constant 0 : index
    %c0_11 = arith.constant 0 : index
    %c0_12 = arith.constant 0 : index
    %16 = vector.load %arg10[%c0_10, %c0_11, %c0_12] : memref<1x3x1xf32, #tpu.memory_space<vmem>>, vector<1x3x1xf32>
    tpu.vector_store %arg10[%c0_10, %c0_11, %c0_12], %15 {strides = array<i32>} : memref<1x3x1xf32, #tpu.memory_space<vmem>>, vector<1x3x1xf32>,
    %c0_13 = arith.constant 0 : index
    %c0_14 = arith.constant 0 : index
    %17 = vector.load %arg4[%c0_13, %c0_14] : memref<32x3xf32, #tpu.memory_space<vmem>>, vector<32x3xf32>
    %18 = vector.extract_strided_slice %11 {offsets = [0, 0, 0], sizes = [1, 1, 512], strides = [1, 1, 1]} : vector<1x3x512xf32> to vector<1x1x512xf32>
    %19 = vector.extract_strided_slice %17 {offsets = [0, 0], sizes = [32, 1], strides = [1, 1]} : vector<32x3xf32> to vector<32x1xf32>
    %20 = vector.shape_cast %19 : vector<32x1xf32> to vector<1x32x1xf32>
    %21 = vector.broadcast %18 : vector<1x1x512xf32> to vector<1x32x512xf32>
    %22 = vector.broadcast %20 : vector<1x32x1xf32> to vector<1x32x512xf32>
    %23 = arith.mulf %21, %22 : vector<1x32x512xf32>
    %24 = vector.extract_strided_slice %11 {offsets = [0, 1, 0], sizes = [1, 1, 512], strides = [1, 1, 1]} : vector<1x3x512xf32> to vector<1x1x512xf32>
    %25 = vector.extract_strided_slice %17 {offsets = [0, 1], sizes = [32, 1], strides = [1, 1]} : vector<32x3xf32> to vector<32x1xf32>
    %26 = vector.shape_cast %25 : vector<32x1xf32> to vector<1x32x1xf32>
    %27 = vector.broadcast %24 : vector<1x1x512xf32> to vector<1x32x512xf32>
    %28 = vector.broadcast %26 : vector<1x32x1xf32> to vector<1x32x512xf32>
    %29 = arith.mulf %27, %28 : vector<1x32x512xf32>
    %30 = arith.addf %23, %29 : vector<1x32x512xf32>
    %31 = vector.extract_strided_slice %11 {offsets = [0, 2, 0], sizes = [1, 1, 512], strides = [1, 1, 1]} : vector<1x3x512xf32> to vector<1x1x512xf32>
    %32 = vector.extract_strided_slice %17 {offsets = [0, 2], sizes = [32, 1], strides = [1, 1]} : vector<32x3xf32> to vector<32x1xf32>
    %33 = vector.shape_cast %32 : vector<32x1xf32> to vector<1x32x1xf32>
    %34 = vector.broadcast %31 : vector<1x1x512xf32> to vector<1x32x512xf32>
    %35 = vector.broadcast %33 : vector<1x32x1xf32> to vector<1x32x512xf32>
    %36 = arith.mulf %34, %35 : vector<1x32x512xf32>
    %37 = arith.addf %30, %36 : vector<1x32x512xf32>
    %c0_15 = arith.constant 0 : index
    %c0_16 = arith.constant 0 : index
    %38 = vector.load %arg5[%c0_15, %c0_16] : memref<32x1xf32, #tpu.memory_space<vmem>>, vector<32x1xf32>
    %39 = vector.shape_cast %38 : vector<32x1xf32> to vector<1x32x1xf32>
    %40 = vector.broadcast %39 : vector<1x32x1xf32> to vector<1x32x512xf32>
    %41 = arith.addf %37, %40 : vector<1x32x512xf32>
    %cst_17 = arith.constant 0.000000e+00 : f32
    %42 = vector.broadcast %cst_17 : f32 to vector<1x32x512xf32>
    %43 = arith.maximumf %41, %42 : vector<1x32x512xf32>
    %c0_18 = arith.constant 0 : index
    %c0_19 = arith.constant 0 : index
    %c0_20 = arith.constant 0 : index
    %44 = vector.load %arg9[%c0_18, %c0_19, %c0_20] : memref<1x32x1xf32, #tpu.memory_space<vmem>>, vector<1x32x1xf32>
    %cst_21 = arith.constant dense<0.000000e+00> : vector<1x32xf32>
    %45 = vector.multi_reduction <add>, %43, %cst_21 [2] : vector<1x32x512xf32> to vector<1x32xf32>
    %46 = vector.shape_cast %45 : vector<1x32xf32> to vector<1x32x1xf32>
    %47 = arith.addf %44, %46 : vector<1x32x1xf32>
    %c0_22 = arith.constant 0 : index
    %c0_23 = arith.constant 0 : index
    %c0_24 = arith.constant 0 : index
    %48 = vector.load %arg9[%c0_22, %c0_23, %c0_24] : memref<1x32x1xf32, #tpu.memory_space<vmem>>, vector<1x32x1xf32>
    tpu.vector_store %arg9[%c0_22, %c0_23, %c0_24], %47 {strides = array<i32>} : memref<1x32x1xf32, #tpu.memory_space<vmem>>, vector<1x32x1xf32>,
    %c1_i32 = arith.constant 1 : i32
    %49 = arith.cmpi eq, %arg1, %c1_i32 : i32
    %50 = arith.extui %49 : i1 to i32
    %c0_i32_25 = arith.constant 0 : i32
    %51 = arith.cmpi ne, %50, %c0_i32_25 : i32
    scf.if %51 {
      %c0_26 = arith.constant 0 : index
      %c0_27 = arith.constant 0 : index
      %c0_28 = arith.constant 0 : index
      %52 = vector.load %arg9[%c0_26, %c0_27, %c0_28] : memref<1x32x1xf32, #tpu.memory_space<vmem>>, vector<1x32x1xf32>
      %cst_29 = arith.constant 9.765625E-4 : f32
      %53 = vector.broadcast %cst_29 : f32 to vector<1x32x1xf32>
      %54 = arith.mulf %52, %53 : vector<1x32x1xf32>
      %c0_30 = arith.constant 0 : index
      %c0_31 = arith.constant 0 : index
      %c0_32 = arith.constant 0 : index
      %55 = vector.load %arg7[%c0_30, %c0_31, %c0_32] : memref<1x32x1xf32, #tpu.memory_space<vmem>>, vector<1x32x1xf32>
      tpu.vector_store %arg7[%c0_30, %c0_31, %c0_32], %54 {strides = array<i32>} : memref<1x32x1xf32, #tpu.memory_space<vmem>>, vector<1x32x1xf32>,
      %c0_33 = arith.constant 0 : index
      %c0_34 = arith.constant 0 : index
      %c0_35 = arith.constant 0 : index
      %56 = vector.load %arg10[%c0_33, %c0_34, %c0_35] : memref<1x3x1xf32, #tpu.memory_space<vmem>>, vector<1x3x1xf32>
      %cst_36 = arith.constant 9.765625E-4 : f32
      %57 = vector.broadcast %cst_36 : f32 to vector<1x3x1xf32>
      %58 = arith.mulf %56, %57 : vector<1x3x1xf32>
      %c0_37 = arith.constant 0 : index
      %c0_38 = arith.constant 0 : index
      %59 = vector.load %arg6[%c0_37, %c0_38] : memref<3x128xf32, #tpu.memory_space<vmem>>, vector<3x128xf32>
      %60 = vector.shape_cast %59 : vector<3x128xf32> to vector<1x3x128xf32>
      %61 = vector.extract_strided_slice %58 {offsets = [0, 0, 0], sizes = [1, 1, 1], strides = [1, 1, 1]} : vector<1x3x1xf32> to vector<1x1x1xf32>
      %62 = vector.extract_strided_slice %60 {offsets = [0, 0, 0], sizes = [1, 1, 128], strides = [1, 1, 1]} : vector<1x3x128xf32> to vector<1x1x128xf32>
      %63 = vector.broadcast %61 : vector<1x1x1xf32> to vector<1x1x128xf32>
      %64 = arith.mulf %63, %62 : vector<1x1x128xf32>
      %65 = vector.extract_strided_slice %58 {offsets = [0, 1, 0], sizes = [1, 1, 1], strides = [1, 1, 1]} : vector<1x3x1xf32> to vector<1x1x1xf32>
      %66 = vector.extract_strided_slice %60 {offsets = [0, 1, 0], sizes = [1, 1, 128], strides = [1, 1, 1]} : vector<1x3x128xf32> to vector<1x1x128xf32>
      %67 = vector.broadcast %65 : vector<1x1x1xf32> to vector<1x1x128xf32>
      %68 = arith.mulf %67, %66 : vector<1x1x128xf32>
      %69 = arith.addf %64, %68 : vector<1x1x128xf32>
      %70 = vector.extract_strided_slice %58 {offsets = [0, 2, 0], sizes = [1, 1, 1], strides = [1, 1, 1]} : vector<1x3x1xf32> to vector<1x1x1xf32>
      %71 = vector.extract_strided_slice %60 {offsets = [0, 2, 0], sizes = [1, 1, 128], strides = [1, 1, 1]} : vector<1x3x128xf32> to vector<1x1x128xf32>
      %72 = vector.broadcast %70 : vector<1x1x1xf32> to vector<1x1x128xf32>
      %73 = arith.mulf %72, %71 : vector<1x1x128xf32>
      %74 = arith.addf %69, %73 : vector<1x1x128xf32>
      %c0_39 = arith.constant 0 : index
      %c0_40 = arith.constant 0 : index
      %c0_41 = arith.constant 0 : index
      %75 = vector.load %arg8[%c0_39, %c0_40, %c0_41] : memref<1x1x128xf32, #tpu.memory_space<vmem>>, vector<1x1x128xf32>
      tpu.vector_store %arg8[%c0_39, %c0_40, %c0_41], %74 {strides = array<i32>} : memref<1x1x128xf32, #tpu.memory_space<vmem>>, vector<1x1x128xf32>,
    } else {
    }
    return
  }
  func.func @transform_0(%arg0: i32, %arg1: i32) -> (i32, i32, i32) {
    %c0_i32 = arith.constant 0 : i32
    %c0_i32_0 = arith.constant 0 : i32
    return %arg0, %c0_i32, %arg1 : i32, i32, i32
  }
  func.func @transform_1(%arg0: i32, %arg1: i32) -> (i32, i32, i32) {
    %c0_i32 = arith.constant 0 : i32
    %c0_i32_0 = arith.constant 0 : i32
    %c0_i32_1 = arith.constant 0 : i32
    return %arg0, %c0_i32, %c0_i32_0 : i32, i32, i32
  }
  func.func @transform_2(%arg0: i32, %arg1: i32) -> (i32, i32) {
    %c0_i32 = arith.constant 0 : i32
    %c0_i32_0 = arith.constant 0 : i32
    %c0_i32_1 = arith.constant 0 : i32
    return %c0_i32, %c0_i32_0 : i32, i32
  }
  func.func @transform_3(%arg0: i32, %arg1: i32) -> (i32, i32) {
    %c0_i32 = arith.constant 0 : i32
    %c0_i32_0 = arith.constant 0 : i32
    %c0_i32_1 = arith.constant 0 : i32
    return %c0_i32, %c0_i32_0 : i32, i32
  }
  func.func @transform_4(%arg0: i32, %arg1: i32) -> (i32, i32) {
    %c0_i32 = arith.constant 0 : i32
    %c0_i32_0 = arith.constant 0 : i32
    %c0_i32_1 = arith.constant 0 : i32
    return %c0_i32, %c0_i32_0 : i32, i32
  }
  func.func @transform_5(%arg0: i32, %arg1: i32) -> (i32, i32, i32) {
    %c0_i32 = arith.constant 0 : i32
    %c0_i32_0 = arith.constant 0 : i32
    %c0_i32_1 = arith.constant 0 : i32
    return %arg0, %c0_i32, %c0_i32_0 : i32, i32, i32
  }
  func.func @transform_6(%arg0: i32, %arg1: i32) -> (i32, i32, i32) {
    %c0_i32 = arith.constant 0 : i32
    %c0_i32_0 = arith.constant 0 : i32
    %c0_i32_1 = arith.constant 0 : i32
    return %arg0, %c0_i32, %c0_i32_0 : i32, i32, i32
  }
}

</mosaic_0001>

<llo_original>
// kernel: tpu_custom_call.1
$region0: #{tpu_custom_call.1}
  #allocation0 [shape = 'u32[]', space=smem, size = 0x4, offset = 0x4, fixed_abs, tag = 'smem constant byte address 0x4 - core index']
  #allocation1 [shape = 'u32[144,128]{1,0:T(1,128)}', space=vmem, size = 0x12000, scoped, tag = 'internal scratch']
  #allocation2 [shape = 'f32[1,32,1]{2,1,0:T(8,128)}', space=vmem, size = 0x4000, scoped, tag = 'scratch operand']
  #allocation3 [shape = 'f32[1,3,1]{2,1,0:T(4,128)}', space=vmem, size = 0x800, scoped, tag = 'scratch operand']
  %s0 = inlined_call_operand.vmem [shape: f32[2,3,1024], index: 0, kind: input, shape index: {}]
  %s1 = inlined_call_operand.vmem [shape: f32[2,3,1], index: 1, kind: input, shape index: {}]
  %s2 = inlined_call_operand.vmem [shape: f32[32,3], index: 2, kind: input, shape index: {}]
  %s3 = inlined_call_operand.vmem [shape: f32[32,1], index: 3, kind: input, shape index: {}]
  %s4 = inlined_call_operand.vmem [shape: f32[3,128], index: 4, kind: input, shape index: {}]
  %s5 = inlined_call_operand.vmem [shape: f32[2,32,1], index: 5, kind: output, shape index: {0}]
  %s6 = inlined_call_operand.hbm [shape: f32[2,1,128], index: 6, kind: output, shape index: {1}]
  %7 = xla_tuple %s5, %s6
  %s8 = sld [smem:[#allocation0]]
  $region69: #{tpu_custom_call.1} parent=0
    _
  %s10 = ssub.s32 1, %s8
  %s11 = scalar_select 0, %s10, %s8
  $region1: #{tpu_custom_call.1} parent=0
    #allocation4 [shape = 'u8[1024]{0}', space=vmem, size = 0x400, scoped, tag = 'output window, operand 1']
    #allocation5 [shape = 's32[2]{0}', space=sflag, size = 0x8, scoped, tag = 'scoped memory for tpu_custom_call.1']
    %12 = vsyncpa [#allocation5], 0
    %s13 = scalar_lea.sflag [#allocation5], 1
    %14 = vsyncpa %s13, 0
    loop: start=0, step=1, limit=6
    $region2: #{tpu_custom_call.1} parent=1 // loop_pre_header
      _
    $region3: #{tpu_custom_call.1} parent=1 // loop_header
      %s16 = sphi 0, %s20
      %p17 = scmp.ge.s32.totalorder %s16, 6
      %s23 = sphi 0, %s35
      %s24 = sphi 0, %s31
      %s25 = sphi 0, %s23
      %s26 = sphi 0, %s24
      %s27 = sphi 0, %s25
      %s28 = sphi 0, %s26
      %s40 = sphi 0, %s42
      %s43 = sphi 0, %s40
      %s44 = sphi 0, %s43
      %s60 = sphi 0, %s44
      %s66 = sphi 0, %s68
      %s69 = sphi 0, %s66
      %s70 = sphi 0, %s69
      %s86 = sphi 0, %s70
      %s90 = sphi 0, %s90
      %s92 = sphi 0, %s90
      %s93 = sphi 0, %s92
      %s107 = sphi 0, %s93
      %s111 = sphi 0, %s111
      %s113 = sphi 0, %s111
      %s114 = sphi 0, %s113
      %s128 = sphi 0, %s114
      %s132 = sphi 0, %s132
      %s134 = sphi 0, %s132
      %s135 = sphi 0, %s134
      %s149 = sphi 0, %s135
      %s155 = sphi 0, %s157
      %s158 = sphi 0, %s155
      %s159 = sphi 0, %s158
      %s175 = sphi 0, %s159
      %s181 = sphi 0, %s183
      %s184 = sphi 0, %s181
      %s185 = sphi 0, %s184
      %s201 = sphi 0, %s185
    $region4: #{tpu_custom_call.1} parent=1 // loop_header_branch
      %19 = sbr.rel (%p17) target = $region8
    $region5: #{tpu_custom_call.1} parent=1 // loop_body
      %s21 = ssub.s32 %s16, 1
      %s22 = ssub.s32 %s16, 2
      %s29 = sadd.s32 1, %s24
      %p30 = scmp.ge.s32.totalorder %s29, 2
      %s31 = scalar_select %p30, 0, %s29
      %s32 = sadd.s32 1, %s23
      %s33 = scalar_select %p30, %s32, %s23
      %p34 = scmp.ge.s32.totalorder %s33, 2
      %s35 = scalar_select %p34, 0, %s33
      %s36 = ssub.s32 %s23, %s35
      %s37 = ssub.s32 %s24, %s31
      %s38 = sor.u32 %s36, %s37
      %p39 = scmp.eq.s32.totalorder %s38, 0
      %s41 = sadd.s32 %s40, 1
      %s42 = scalar_select %p39, %s40, %s41
      %p45 = pneg %p39
      %p46 = scmp.eq.s32.totalorder %s16, 3
      %p47 = por %p45, %p46
      %p48 = scmp.ne.s32.totalorder %s40, %s43
      %p49 = scmp.eq.s32.totalorder %s16, 0
      %p50 = por %p48, %p49
      %p51 = scmp.ne.s32.totalorder %s40, %s43
      %p52 = scmp.eq.s32.totalorder %s21, 3
      %p53 = por %p51, %p52
      %p54 = scmp.ne.s32.totalorder %s43, %s44
      %p55 = scmp.eq.s32.totalorder %s21, 0
      %p56 = por %p54, %p55
      %p57 = scmp.ne.s32.totalorder %s43, %s44
      %p58 = scmp.eq.s32.totalorder %s22, 3
      %p59 = por %p57, %p58
      %p61 = scmp.ne.s32.totalorder %s44, %s60
      %p62 = scmp.eq.s32.totalorder %s22, 0
      %p63 = por %p61, %p62
      %s64 = ssub.s32 %s23, %s35
      %p65 = scmp.eq.s32.totalorder %s64, 0
      %s67 = sadd.s32 %s66, 1
      %s68 = scalar_select %p65, %s66, %s67
      %p71 = pneg %p65
      %p72 = scmp.eq.s32.totalorder %s16, 3
      %p73 = por %p71, %p72
      %p74 = scmp.ne.s32.totalorder %s66, %s69
      %p75 = scmp.eq.s32.totalorder %s16, 0
      %p76 = por %p74, %p75
      %p77 = scmp.ne.s32.totalorder %s66, %s69
      %p78 = scmp.eq.s32.totalorder %s21, 3
      %p79 = por %p77, %p78
      %p80 = scmp.ne.s32.totalorder %s69, %s70
      %p81 = scmp.eq.s32.totalorder %s21, 0
      %p82 = por %p80, %p81
      %p83 = scmp.ne.s32.totalorder %s69, %s70
      %p84 = scmp.eq.s32.totalorder %s22, 3
      %p85 = por %p83, %p84
      %p87 = scmp.ne.s32.totalorder %s70, %s86
      %p88 = scmp.eq.s32.totalorder %s22, 0
      %p89 = por %p87, %p88
      %s91 = sadd.s32 %s90, 1
      %p94 = scmp.eq.s32.totalorder %s16, 3
      %p95 = scmp.ne.s32.totalorder %s90, %s92
      %p96 = scmp.eq.s32.totalorder %s16, 0
      %p97 = por %p95, %p96
      %p98 = scmp.ne.s32.totalorder %s90, %s92
      %p99 = scmp.eq.s32.totalorder %s21, 3
      %p100 = por %p98, %p99
      %p101 = scmp.ne.s32.totalorder %s92, %s93
      %p102 = scmp.eq.s32.totalorder %s21, 0
      %p103 = por %p101, %p102
      %p104 = scmp.ne.s32.totalorder %s92, %s93
      %p105 = scmp.eq.s32.totalorder %s22, 3
      %p106 = por %p104, %p105
      %p108 = scmp.ne.s32.totalorder %s93, %s107
      %p109 = scmp.eq.s32.totalorder %s22, 0
      %p110 = por %p108, %p109
      %s112 = sadd.s32 %s111, 1
      %p115 = scmp.eq.s32.totalorder %s16, 3
      %p116 = scmp.ne.s32.totalorder %s111, %s113
      %p117 = scmp.eq.s32.totalorder %s16, 0
      %p118 = por %p116, %p117
      %p119 = scmp.ne.s32.totalorder %s111, %s113
      %p120 = scmp.eq.s32.totalorder %s21, 3
      %p121 = por %p119, %p120
      %p122 = scmp.ne.s32.totalorder %s113, %s114
      %p123 = scmp.eq.s32.totalorder %s21, 0
      %p124 = por %p122, %p123
      %p125 = scmp.ne.s32.totalorder %s113, %s114
      %p126 = scmp.eq.s32.totalorder %s22, 3
      %p127 = por %p125, %p126
      %p129 = scmp.ne.s32.totalorder %s114, %s128
      %p130 = scmp.eq.s32.totalorder %s22, 0
      %p131 = por %p129, %p130
      %s133 = sadd.s32 %s132, 1
      %p136 = scmp.eq.s32.totalorder %s16, 3
      %p137 = scmp.ne.s32.totalorder %s132, %s134
      %p138 = scmp.eq.s32.totalorder %s16, 0
      %p139 = por %p137, %p138
      %p140 = scmp.ne.s32.totalorder %s132, %s134
      %p141 = scmp.eq.s32.totalorder %s21, 3
      %p142 = por %p140, %p141
      %p143 = scmp.ne.s32.totalorder %s134, %s135
      %p144 = scmp.eq.s32.totalorder %s21, 0
      %p145 = por %p143, %p144
      %p146 = scmp.ne.s32.totalorder %s134, %s135
      %p147 = scmp.eq.s32.totalorder %s22, 3
      %p148 = por %p146, %p147
      %p150 = scmp.ne.s32.totalorder %s135, %s149
      %p151 = scmp.eq.s32.totalorder %s22, 0
      %p152 = por %p150, %p151
      %s153 = ssub.s32 %s23, %s35
      %p154 = scmp.eq.s32.totalorder %s153, 0
      %s156 = sadd.s32 %s155, 1
      %s157 = scalar_select %p154, %s155, %s156
      %p160 = pneg %p154
      %p161 = scmp.eq.s32.totalorder %s16, 3
      %p162 = por %p160, %p161
      %p163 = scmp.ne.s32.totalorder %s155, %s158
      %p164 = scmp.eq.s32.totalorder %s16, 0
      %p165 = por %p163, %p164
      %p166 = scmp.ne.s32.totalorder %s155, %s158
      %p167 = scmp.eq.s32.totalorder %s21, 3
      %p168 = por %p166, %p167
      %p169 = scmp.ne.s32.totalorder %s158, %s159
      %p170 = scmp.eq.s32.totalorder %s21, 0
      %p171 = por %p169, %p170
      %p172 = scmp.ne.s32.totalorder %s158, %s159
      %p173 = scmp.eq.s32.totalorder %s22, 3
      %p174 = por %p172, %p173
      %p176 = scmp.ne.s32.totalorder %s159, %s175
      %p177 = scmp.eq.s32.totalorder %s22, 0
      %p178 = por %p176, %p177
      %s179 = ssub.s32 %s23, %s35
      %p180 = scmp.eq.s32.totalorder %s179, 0
      %s182 = sadd.s32 %s181, 1
      %s183 = scalar_select %p180, %s181, %s182
      %p186 = pneg %p180
      %p187 = scmp.eq.s32.totalorder %s16, 3
      %p188 = por %p186, %p187
      %p189 = scmp.ne.s32.totalorder %s181, %s184
      %p190 = scmp.eq.s32.totalorder %s16, 0
      %p191 = por %p189, %p190
      %p192 = scmp.ne.s32.totalorder %s181, %s184
      %p193 = scmp.eq.s32.totalorder %s21, 3
      %p194 = por %p192, %p193
      %p195 = scmp.ne.s32.totalorder %s184, %s185
      %p196 = scmp.eq.s32.totalorder %s21, 0
      %p197 = por %p195, %p196
      %p198 = scmp.ne.s32.totalorder %s184, %s185
      %p199 = scmp.eq.s32.totalorder %s22, 3
      %p200 = por %p198, %p199
      %p202 = scmp.ne.s32.totalorder %s185, %s201
      %p203 = scmp.eq.s32.totalorder %s22, 0
      %p204 = por %p202, %p203
      %p205 = scmp.le.s32.totalorder 1, %s16
      %p206 = scmp.lt.s32.totalorder %s16, 5
      %p207 = pnand %p205, %p206
      %p208 = pneg %p207
      // Predicated region
      $region9: #{tpu_custom_call.1} parent=5 // pred_check
        _
      $region10: #{tpu_custom_call.1} parent=5 // pred_check_branch
        %210 = sbr.rel (%p207) target = $region12
      $region11: #{tpu_custom_call.1} parent=5 // pred_region
        %s211 = ssub.s32 %s16, 1
        // Predicated region
        $region13: #{tpu_custom_call.1} parent=11 // pred_check
          %p212 = pneg %p103
        $region14: #{tpu_custom_call.1} parent=11 // pred_check_branch
          %214 = sbr.rel (%p212) target = $region16
        $region15: #{tpu_custom_call.1} parent=11 // pred_region
          _
        $region16: #{tpu_custom_call.1} parent=11 // pred_fallthru
          _
        // Predicated region
        $region17: #{tpu_custom_call.1} parent=11 // pred_check
          %p215 = pneg %p124
        $region18: #{tpu_custom_call.1} parent=11 // pred_check_branch
          %217 = sbr.rel (%p215) target = $region20
        $region19: #{tpu_custom_call.1} parent=11 // pred_region
          _
        $region20: #{tpu_custom_call.1} parent=11 // pred_fallthru
          _
        // Predicated region
        $region21: #{tpu_custom_call.1} parent=11 // pred_check
          %p218 = pneg %p145
        $region22: #{tpu_custom_call.1} parent=11 // pred_check_branch
          %220 = sbr.rel (%p218) target = $region24
        $region23: #{tpu_custom_call.1} parent=11 // pred_region
          _
        $region24: #{tpu_custom_call.1} parent=11 // pred_fallthru
          _
      $region12: #{tpu_custom_call.1} parent=5 // pred_fallthru
        _
      %p221 = scmp.lt.s32.totalorder %s16, 4
      // Predicated region
      $region25: #{tpu_custom_call.1} parent=5 // pred_check
        %p222 = pneg %p221
      $region26: #{tpu_custom_call.1} parent=5 // pred_check_branch
        %224 = sbr.rel (%p222) target = $region28
      $region27: #{tpu_custom_call.1} parent=5 // pred_region
        // Predicated region
        $region29: #{tpu_custom_call.1} parent=27 // pred_check
          %p225 = pneg %p50
        $region30: #{tpu_custom_call.1} parent=27 // pred_check_branch
          %227 = sbr.rel (%p225) target = $region32
        $region31: #{tpu_custom_call.1} parent=27 // pred_region
          %s228 = smul.u32 4, %s24
          %p229 = scmp.lt.s32.totalorder %s23, 1
          %s230 = scalar_select %p229, %s23, 1
          %p231 = scmp.lt.s32.totalorder %s228, 7
          %s232 = scalar_select %p231, %s228, 7
          %s233 = smul.addr %s230, 8
          %s234 = sadd.s32 %s232, %s233
          %s235 = smul.addr %s234, 4
          %s236 = scalar_lea.vmem %s0, %s235
          %s237 = smul.u32 4, %s24
        $region32: #{tpu_custom_call.1} parent=27 // pred_fallthru
          _
        // Predicated region
        $region33: #{tpu_custom_call.1} parent=27 // pred_check
          %p238 = pneg %p76
        $region34: #{tpu_custom_call.1} parent=27 // pred_check_branch
          %240 = sbr.rel (%p238) target = $region36
        $region35: #{tpu_custom_call.1} parent=27 // pred_region
          %p241 = scmp.lt.s32.totalorder %s23, 1
          %s242 = scalar_select %p241, %s23, 1
          %s243 = smul.addr %s242, 4
          %s244 = scalar_lea.vmem %s1, %s243
        $region36: #{tpu_custom_call.1} parent=27 // pred_fallthru
          _
      $region28: #{tpu_custom_call.1} parent=5 // pred_fallthru
        _
      %p245 = scmp.le.s32.totalorder 1, %s16
      %p246 = scmp.lt.s32.totalorder %s16, 5
      %p247 = pnand %p245, %p246
      %p248 = pneg %p247
      // Predicated region
      $region37: #{tpu_custom_call.1} parent=5 // pred_check
        _
      $region38: #{tpu_custom_call.1} parent=5 // pred_check_branch
        %250 = sbr.rel (%p247) target = $region40
      $region39: #{tpu_custom_call.1} parent=5 // pred_region
        %s251 = ssub.s32 %s16, 1
        %s252 = smul.u32 4, %s26
        %p253 = scmp.lt.s32.totalorder %s25, 1
        %s254 = scalar_select %p253, %s25, 1
        %p255 = scmp.lt.s32.totalorder %s252, 7
        %s256 = scalar_select %p255, %s252, 7
        %s257 = smul.addr %s254, 8
        %s258 = sadd.s32 %s256, %s257
        %s259 = smul.addr %s258, 4
        %s260 = scalar_lea.vmem %s0, %s259
        %p261 = pneg %p56
        %p262 = pneg %p53
        %p263 = scmp.lt.s32.totalorder %s25, 1
        %s264 = scalar_select %p263, %s25, 1
        %s265 = smul.addr %s264, 4
        %s266 = scalar_lea.vmem %s1, %s265
        %p267 = pneg %p82
        %p268 = pneg %p79
        %p269 = pneg %p103
        %p270 = pneg %p100
        %p271 = pneg %p124
        %p272 = pneg %p121
        %p273 = pneg %p145
        %p274 = pneg %p142
        %p275 = pneg %p171
        %p276 = pneg %p168
        %p277 = scmp.lt.s32.totalorder %s25, 1
        %s278 = scalar_select %p277, %s25, 1
        %s279 = smul.addr %s278, 4
        %s280 = smul.addr %s279, 8
        %s281 = scalar_lea.vmem %s5, %s280
        %p282 = pneg %p197
        %p283 = pneg %p194
        %s284 = sand.u32 %s184, 1
        %s285 = scalar_lea.sflag [#allocation5], %s284
        %s286 = sand.u32 %s184, 1
        %s287 = scalar_lea.vmem [#allocation4], %s286
        %s288 = smul.u32 4, %s26
        %p289 = scmp.lt.s32.totalorder %s25, 1
        %s290 = scalar_select %p289, %s25, 1
        %p291 = scmp.lt.s32.totalorder %s288, 7
        %s292 = scalar_select %p291, %s288, 7
        %s293 = smul.addr %s290, 8
        %s294 = sadd.s32 %s292, %s293
        %s295 = smul.addr %s294, 4
        %s296 = scalar_lea.vmem %s0, %s295
        %s297 = smul.u32 4, %s26
        %p298 = scmp.lt.s32.totalorder %s25, 1
        %s299 = scalar_select %p298, %s25, 1
        %s300 = smul.addr %s299, 4
        %s301 = scalar_lea.vmem %s1, %s300
        %p302 = scmp.lt.s32.totalorder %s25, 1
        %s303 = scalar_select %p302, %s25, 1
        %s304 = smul.addr %s303, 4
        %s305 = smul.addr %s304, 8
        %s306 = scalar_lea.vmem %s5, %s305
        %p307 = scmp.eq.s32.totalorder %s26, 0
        // Predicated region
        $region41: #{tpu_custom_call.1} parent=39 // pred_check
          %p308 = pneg %p307
        $region42: #{tpu_custom_call.1} parent=39 // pred_check_branch
          %310 = sbr.rel (%p308) target = $region44
        $region43: #{tpu_custom_call.1} parent=39 // pred_region
          %vm311 = vcmask 7168
          %312 = vst.msk [vmem:[#allocation2] sm:$0xff] %vm311, 0.0
          %313 = vst.msk [vmem:[#allocation2 + $0x8] sm:$0xff] %vm311, 0.0
          %314 = vst.msk [vmem:[#allocation2 + $0x10] sm:$0xff] %vm311, 0.0
          %315 = vst.msk [vmem:[#allocation2 + $0x18] sm:$0xff] %vm311, 0.0
          %vm316 = vcmask 2048
          %317 = vst.msk [vmem:[#allocation3] sm:$0x7] %vm316, 0.0
        $region44: #{tpu_custom_call.1} parent=39 // pred_fallthru
          _
        %v318 = vld [vmem:[%s296] sm:$0x77]
        %v319 = vld [vmem:[%s296 + $0x8] sm:$0x77]
        %v320 = vld [vmem:[%s301] sm:$0x7]
        %v321 = vxor.u32 %v320, 2147483648
        %v322 = vmul.f32 %v321, 1.442695
        %v323 = vpow.pop %v322
        %v324 = vadd.f32 %v323, 1.0
        %v325 = vrcp.pop %v324
        %v326 = vmul.f32 1.0, %v325
        %328 = vset.pattern.permute.xlu0 0
        %329 = vperm.xlu0 %328, %v326
        %v330 = vpop.permute.xlu0 %329
        %v332 = vunpack.c.l.s4 839922192
        %v333 = vunpack.c.0.s8 %v332
        %v334 = vlaneseq
        %v335 = vshrl.u32 %v334, 7
        %v336 = vsub.s32 %v333, %v335
        %v337 = vrot.slane %v330, %v336
        %v339 = vmul.f32 %v318, %v337
        %v340 = vmul.f32 %v319, %v337
        %v341 = vld [vmem:[#allocation3] sm:$0x7]
        %v344 = vcombine.high %v339, %v339
        %v345 = vcombine.high %v340, %v340
        %vm348 = vcmask 1042432
        %v349 = vsel %vm348, %v339, 0.0
        %v350 = vsel %vm348, %v344, 0.0
        %v351 = vadd.f32 %v349, %v350
        %v352 = vsel %vm348, %v340, 0.0
        %v353 = vadd.f32 %v351, %v352
        %v354 = vsel %vm348, %v345, 0.0
        %v355 = vadd.f32 %v353, %v354
        %356 = vadd.xlane.f32.xlu0 %v355
        %v357 = vpop.xlane.xlu0 %356
        %v358 = vadd.f32 %v341, %v357
        %vm359 = vcmask 2048
        %360 = vst.msk [vmem:[#allocation3] sm:$0x7] %vm359, %v358
        %v361 = vld [vmem:[%s2] sm:$0xff]
        %v362 = vld [vmem:[%s2 + $0x8] sm:$0xff]
        %v363 = vld [vmem:[%s2 + $0x10] sm:$0xff]
        %v364 = vld [vmem:[%s2 + $0x18] sm:$0xff]
        %v365 = vlaneseq
        %v366 = vshrl.u32 %v365, 7
        %v367 = vsub.s32 0, %v366
        %v368 = vrot.slane %v339, %v367
        %v369 = vlaneseq
        %v370 = vshrl.u32 %v369, 7
        %v371 = vsub.s32 4, %v370
        %v372 = vrot.slane %v339, %v371
        %v373 = vlaneseq
        %v374 = vshrl.u32 %v373, 7
        %v375 = vsub.s32 0, %v374
        %v376 = vrot.slane %v340, %v375
        %v377 = vlaneseq
        %v378 = vshrl.u32 %v377, 7
        %v379 = vsub.s32 4, %v378
        %v380 = vrot.slane %v340, %v379
        %v385 = vlaneseq
        %v386 = vshrl.u32 %v385, 7
        %v387 = vsub.s32 0, %v386
        %v388 = vrot.slane %v368, %v387
        %v389 = vlaneseq
        %v390 = vshrl.u32 %v389, 7
        %v391 = vsub.s32 0, %v390
        %v392 = vrot.slane %v372, %v391
        %v393 = vlaneseq
        %v394 = vshrl.u32 %v393, 7
        %v395 = vsub.s32 0, %v394
        %v396 = vrot.slane %v376, %v395
        %v397 = vlaneseq
        %v398 = vshrl.u32 %v397, 7
        %v399 = vsub.s32 0, %v398
        %v400 = vrot.slane %v380, %v399
        %402 = vset.pattern.permute.xlu0 0
        %403 = vperm.xlu0 %402, %v361
        %v404 = vpop.permute.xlu0 %403
        %407 = vset.pattern.permute.xlu0 0
        %408 = vperm.xlu0 %407, %v362
        %v409 = vpop.permute.xlu0 %408
        %412 = vset.pattern.permute.xlu0 0
        %413 = vperm.xlu0 %412, %v363
        %v414 = vpop.permute.xlu0 %413
        %417 = vset.pattern.permute.xlu0 0
        %418 = vperm.xlu0 %417, %v364
        %v419 = vpop.permute.xlu0 %418
        %v421 = vmul.f32 %v388, %v404
        %v422 = vmul.f32 %v392, %v404
        %v423 = vmul.f32 %v396, %v404
        %v424 = vmul.f32 %v400, %v404
        %v425 = vmul.f32 %v388, %v409
        %v426 = vmul.f32 %v392, %v409
        %v427 = vmul.f32 %v396, %v409
        %v428 = vmul.f32 %v400, %v409
        %v429 = vmul.f32 %v388, %v414
        %v430 = vmul.f32 %v392, %v414
        %v431 = vmul.f32 %v396, %v414
        %v432 = vmul.f32 %v400, %v414
        %v433 = vmul.f32 %v388, %v419
        %v434 = vmul.f32 %v392, %v419
        %v435 = vmul.f32 %v396, %v419
        %v436 = vmul.f32 %v400, %v419
        %v437 = vlaneseq
        %v438 = vshrl.u32 %v437, 7
        %v439 = vsub.s32 1, %v438
        %v440 = vrot.slane %v339, %v439
        %v441 = vlaneseq
        %v442 = vshrl.u32 %v441, 7
        %v443 = vsub.s32 5, %v442
        %v444 = vrot.slane %v339, %v443
        %v445 = vlaneseq
        %v446 = vshrl.u32 %v445, 7
        %v447 = vsub.s32 1, %v446
        %v448 = vrot.slane %v340, %v447
        %v449 = vlaneseq
        %v450 = vshrl.u32 %v449, 7
        %v451 = vsub.s32 5, %v450
        %v452 = vrot.slane %v340, %v451
        %v457 = vlaneseq
        %v458 = vshrl.u32 %v457, 7
        %v459 = vsub.s32 1, %v458
        %v460 = vrot.slane %v440, %v459
        %v461 = vlaneseq
        %v462 = vshrl.u32 %v461, 7
        %v463 = vsub.s32 1, %v462
        %v464 = vrot.slane %v444, %v463
        %v465 = vlaneseq
        %v466 = vshrl.u32 %v465, 7
        %v467 = vsub.s32 1, %v466
        %v468 = vrot.slane %v448, %v467
        %v469 = vlaneseq
        %v470 = vshrl.u32 %v469, 7
        %v471 = vsub.s32 1, %v470
        %v472 = vrot.slane %v452, %v471
        %473 = vset.pattern.permute.xlu0 1
        %474 = vperm.xlu0 %473, %v361
        %v475 = vpop.permute.xlu0 %474
        %477 = vset.pattern.permute.xlu0 1
        %478 = vperm.xlu0 %477, %v362
        %v479 = vpop.permute.xlu0 %478
        %481 = vset.pattern.permute.xlu0 1
        %482 = vperm.xlu0 %481, %v363
        %v483 = vpop.permute.xlu0 %482
        %485 = vset.pattern.permute.xlu0 1
        %486 = vperm.xlu0 %485, %v364
        %v487 = vpop.permute.xlu0 %486
        %v489 = vmul.f32 %v460, %v475
        %v490 = vmul.f32 %v464, %v475
        %v491 = vmul.f32 %v468, %v475
        %v492 = vmul.f32 %v472, %v475
        %v493 = vmul.f32 %v460, %v479
        %v494 = vmul.f32 %v464, %v479
        %v495 = vmul.f32 %v468, %v479
        %v496 = vmul.f32 %v472, %v479
        %v497 = vmul.f32 %v460, %v483
        %v498 = vmul.f32 %v464, %v483
        %v499 = vmul.f32 %v468, %v483
        %v500 = vmul.f32 %v472, %v483
        %v501 = vmul.f32 %v460, %v487
        %v502 = vmul.f32 %v464, %v487
        %v503 = vmul.f32 %v468, %v487
        %v504 = vmul.f32 %v472, %v487
        %v505 = vadd.f32 %v421, %v489
        %v506 = vadd.f32 %v422, %v490
        %v507 = vadd.f32 %v423, %v491
        %v508 = vadd.f32 %v424, %v492
        %v509 = vadd.f32 %v425, %v493
        %v510 = vadd.f32 %v426, %v494
        %v511 = vadd.f32 %v427, %v495
        %v512 = vadd.f32 %v428, %v496
        %v513 = vadd.f32 %v429, %v497
        %v514 = vadd.f32 %v430, %v498
        %v515 = vadd.f32 %v431, %v499
        %v516 = vadd.f32 %v432, %v500
        %v517 = vadd.f32 %v433, %v501
        %v518 = vadd.f32 %v434, %v502
        %v519 = vadd.f32 %v435, %v503
        %v520 = vadd.f32 %v436, %v504
        %v521 = vlaneseq
        %v522 = vshrl.u32 %v521, 7
        %v523 = vsub.s32 2, %v522
        %v524 = vrot.slane %v339, %v523
        %v525 = vlaneseq
        %v526 = vshrl.u32 %v525, 7
        %v527 = vsub.s32 6, %v526
        %v528 = vrot.slane %v339, %v527
        %v529 = vlaneseq
        %v530 = vshrl.u32 %v529, 7
        %v531 = vsub.s32 2, %v530
        %v532 = vrot.slane %v340, %v531
        %v533 = vlaneseq
        %v534 = vshrl.u32 %v533, 7
        %v535 = vsub.s32 6, %v534
        %v536 = vrot.slane %v340, %v535
        %v541 = vlaneseq
        %v542 = vshrl.u32 %v541, 7
        %v543 = vsub.s32 2, %v542
        %v544 = vrot.slane %v524, %v543
        %v545 = vlaneseq
        %v546 = vshrl.u32 %v545, 7
        %v547 = vsub.s32 2, %v546
        %v548 = vrot.slane %v528, %v547
        %v549 = vlaneseq
        %v550 = vshrl.u32 %v549, 7
        %v551 = vsub.s32 2, %v550
        %v552 = vrot.slane %v532, %v551
        %v553 = vlaneseq
        %v554 = vshrl.u32 %v553, 7
        %v555 = vsub.s32 2, %v554
        %v556 = vrot.slane %v536, %v555
        %557 = vset.pattern.permute.xlu0 2
        %558 = vperm.xlu0 %557, %v361
        %v559 = vpop.permute.xlu0 %558
        %561 = vset.pattern.permute.xlu0 2
        %562 = vperm.xlu0 %561, %v362
        %v563 = vpop.permute.xlu0 %562
        %565 = vset.pattern.permute.xlu0 2
        %566 = vperm.xlu0 %565, %v363
        %v567 = vpop.permute.xlu0 %566
        %569 = vset.pattern.permute.xlu0 2
        %570 = vperm.xlu0 %569, %v364
        %v571 = vpop.permute.xlu0 %570
        %v573 = vmul.f32 %v544, %v559
        %v574 = vmul.f32 %v548, %v559
        %v575 = vmul.f32 %v552, %v559
        %v576 = vmul.f32 %v556, %v559
        %v577 = vmul.f32 %v544, %v563
        %v578 = vmul.f32 %v548, %v563
        %v579 = vmul.f32 %v552, %v563
        %v580 = vmul.f32 %v556, %v563
        %v581 = vmul.f32 %v544, %v567
        %v582 = vmul.f32 %v548, %v567
        %v583 = vmul.f32 %v552, %v567
        %v584 = vmul.f32 %v556, %v567
        %v585 = vmul.f32 %v544, %v571
        %v586 = vmul.f32 %v548, %v571
        %v587 = vmul.f32 %v552, %v571
        %v588 = vmul.f32 %v556, %v571
        %v589 = vadd.f32 %v505, %v573
        %v590 = vadd.f32 %v506, %v574
        %v591 = vadd.f32 %v507, %v575
        %v592 = vadd.f32 %v508, %v576
        %v593 = vadd.f32 %v509, %v577
        %v594 = vadd.f32 %v510, %v578
        %v595 = vadd.f32 %v511, %v579
        %v596 = vadd.f32 %v512, %v580
        %v597 = vadd.f32 %v513, %v581
        %v598 = vadd.f32 %v514, %v582
        %v599 = vadd.f32 %v515, %v583
        %v600 = vadd.f32 %v516, %v584
        %v601 = vadd.f32 %v517, %v585
        %v602 = vadd.f32 %v518, %v586
        %v603 = vadd.f32 %v519, %v587
        %v604 = vadd.f32 %v520, %v588
        %v605 = vld [vmem:[%s3] sm:$0xff]
        %v606 = vld [vmem:[%s3 + $0x8] sm:$0xff]
        %v607 = vld [vmem:[%s3 + $0x10] sm:$0xff]
        %v608 = vld [vmem:[%s3 + $0x18] sm:$0xff]
        %610 = vset.pattern.permute.xlu0 0
        %611 = vperm.xlu0 %610, %v605
        %v612 = vpop.permute.xlu0 %611
        %615 = vset.pattern.permute.xlu0 0
        %616 = vperm.xlu0 %615, %v606
        %v617 = vpop.permute.xlu0 %616
        %620 = vset.pattern.permute.xlu0 0
        %621 = vperm.xlu0 %620, %v607
        %v622 = vpop.permute.xlu0 %621
        %625 = vset.pattern.permute.xlu0 0
        %626 = vperm.xlu0 %625, %v608
        %v627 = vpop.permute.xlu0 %626
        %v629 = vadd.f32 %v589, %v612
        %v630 = vadd.f32 %v590, %v612
        %v631 = vadd.f32 %v591, %v612
        %v632 = vadd.f32 %v592, %v612
        %v633 = vadd.f32 %v593, %v617
        %v634 = vadd.f32 %v594, %v617
        %v635 = vadd.f32 %v595, %v617
        %v636 = vadd.f32 %v596, %v617
        %v637 = vadd.f32 %v597, %v622
        %v638 = vadd.f32 %v598, %v622
        %v639 = vadd.f32 %v599, %v622
        %v640 = vadd.f32 %v600, %v622
        %v641 = vadd.f32 %v601, %v627
        %v642 = vadd.f32 %v602, %v627
        %v643 = vadd.f32 %v603, %v627
        %v644 = vadd.f32 %v604, %v627
        %v645 = vmax.f32 %v629, 0.0
        %v646 = vmax.f32 %v630, 0.0
        %v647 = vmax.f32 %v631, 0.0
        %v648 = vmax.f32 %v632, 0.0
        %v649 = vmax.f32 %v633, 0.0
        %v650 = vmax.f32 %v634, 0.0
        %v651 = vmax.f32 %v635, 0.0
        %v652 = vmax.f32 %v636, 0.0
        %v653 = vmax.f32 %v637, 0.0
        %v654 = vmax.f32 %v638, 0.0
        %v655 = vmax.f32 %v639, 0.0
        %v656 = vmax.f32 %v640, 0.0
        %v657 = vmax.f32 %v641, 0.0
        %v658 = vmax.f32 %v642, 0.0
        %v659 = vmax.f32 %v643, 0.0
        %v660 = vmax.f32 %v644, 0.0
        %v661 = vld [vmem:[#allocation2] sm:$0xff]
        %v662 = vld [vmem:[#allocation2 + $0x8] sm:$0xff]
        %v663 = vld [vmem:[#allocation2 + $0x10] sm:$0xff]
        %v664 = vld [vmem:[#allocation2 + $0x18] sm:$0xff]
        %v665 = vadd.f32 %v645, %v646
        %v666 = vadd.f32 %v665, %v647
        %v667 = vadd.f32 %v666, %v648
        %668 = vadd.xlane.f32.xlu0 %v667
        %v669 = vpop.xlane.xlu0 %668
        %v670 = vadd.f32 %v649, %v650
        %v671 = vadd.f32 %v670, %v651
        %v672 = vadd.f32 %v671, %v652
        %673 = vadd.xlane.f32.xlu0 %v672
        %v674 = vpop.xlane.xlu0 %673
        %v675 = vadd.f32 %v653, %v654
        %v676 = vadd.f32 %v675, %v655
        %v677 = vadd.f32 %v676, %v656
        %678 = vadd.xlane.f32.xlu0 %v677
        %v679 = vpop.xlane.xlu0 %678
        %v680 = vadd.f32 %v657, %v658
        %v681 = vadd.f32 %v680, %v659
        %v682 = vadd.f32 %v681, %v660
        %683 = vadd.xlane.f32.xlu0 %v682
        %v684 = vpop.xlane.xlu0 %683
        %v685 = vadd.f32 %v661, %v669
        %v686 = vadd.f32 %v662, %v674
        %v687 = vadd.f32 %v663, %v679
        %v688 = vadd.f32 %v664, %v684
        %vm689 = vcmask 7168
        %690 = vst.msk [vmem:[#allocation2] sm:$0xff] %vm689, %v685
        %691 = vst.msk [vmem:[#allocation2 + $0x8] sm:$0xff] %vm689, %v686
        %692 = vst.msk [vmem:[#allocation2 + $0x10] sm:$0xff] %vm689, %v687
        %693 = vst.msk [vmem:[#allocation2 + $0x18] sm:$0xff] %vm689, %v688
        %p694 = scmp.eq.s32.totalorder %s26, 1
        // Predicated region
        $region45: #{tpu_custom_call.1} parent=39 // pred_check
          %p695 = pneg %p694
        $region46: #{tpu_custom_call.1} parent=39 // pred_check_branch
          %697 = sbr.rel (%p695) target = $region48
        $region47: #{tpu_custom_call.1} parent=39 // pred_region
          %v698 = vld [vmem:[#allocation2] sm:$0xff]
          %v699 = vld [vmem:[#allocation2 + $0x8] sm:$0xff]
          %v700 = vld [vmem:[#allocation2 + $0x10] sm:$0xff]
          %v701 = vld [vmem:[#allocation2 + $0x18] sm:$0xff]
          %v702 = vmul.f32 %v698, 0.0009765625
          %v703 = vmul.f32 %v699, 0.0009765625
          %v704 = vmul.f32 %v700, 0.0009765625
          %v705 = vmul.f32 %v701, 0.0009765625
          %706 = vst.msk [vmem:[%s306] sm:$0xff] %vm689, %v702
          %707 = vst.msk [vmem:[%s306 + $0x8] sm:$0xff] %vm689, %v703
          %708 = vst.msk [vmem:[%s306 + $0x10] sm:$0xff] %vm689, %v704
          %709 = vst.msk [vmem:[%s306 + $0x18] sm:$0xff] %vm689, %v705
          %v710 = vld [vmem:[#allocation3] sm:$0x7]
          %v711 = vmul.f32 %v710, 0.0009765625
          %v712 = vld [vmem:[%s4] sm:$0x7]
          %714 = vset.pattern.permute.xlu0 0
          %715 = vperm.xlu0 %714, %v711
          %v716 = vpop.permute.xlu0 %715
          %v718 = vmul.f32 %v716, %v712
          %v720 = vrot.slane %v718, 1
          %v722 = vadd.f32 %v718, %v720
          %v723 = vrot.slane %v718, 2
          %v725 = vadd.f32 %v722, %v723
          %726 = vst [vmem:[%s287] sm:$0x1] %v725
        $region48: #{tpu_custom_call.1} parent=39 // pred_fallthru
          _
        %p727 = scmp.lt.s32.totalorder %s25, 1
        %s728 = scalar_select %p727, %s25, 1
        %s729 = smul.addr %s728, 4
        %s730 = smul.addr %s729, 8
        %s731 = scalar_lea.vmem %s5, %s730
        %s732 = sand.u32 %s184, 1
        %s733 = scalar_lea.sflag [#allocation5], %s732
        %s734 = sand.u32 %s184, 1
        %s735 = scalar_lea.vmem [#allocation4], %s734
        // Predicated region
        $region49: #{tpu_custom_call.1} parent=39 // pred_check
          %p736 = pneg %p168
        $region50: #{tpu_custom_call.1} parent=39 // pred_check_branch
          %738 = sbr.rel (%p736) target = $region52
        $region51: #{tpu_custom_call.1} parent=39 // pred_region
          _
        $region52: #{tpu_custom_call.1} parent=39 // pred_fallthru
          _
        // Predicated region
        $region53: #{tpu_custom_call.1} parent=39 // pred_check
          %p739 = pneg %p194
        $region54: #{tpu_custom_call.1} parent=39 // pred_check_branch
          %741 = sbr.rel (%p739) target = $region56
        $region55: #{tpu_custom_call.1} parent=39 // pred_region
          %s743 = ssub.s32 16, 16
          %744 = vsyncadd %s733, %s743
          %s745 = smul.addr %s25, 16
          %s746 = scalar_lea.hbm %s6, %s745
          %s748 = sshll.u32 %s735, 4
          %s749 = int_to_ptr.vmem [resolvable:$true] %s748
          %751 = dma.vmem_to_hbm [thread:$0]  %s749, 16, %s746, %s733
        $region56: #{tpu_custom_call.1} parent=39 // pred_fallthru
          _
      $region40: #{tpu_custom_call.1} parent=5 // pred_fallthru
        _
      %p752 = scmp.le.s32.totalorder 2, %s16
      // Predicated region
      $region57: #{tpu_custom_call.1} parent=5 // pred_check
        %p753 = pneg %p752
      $region58: #{tpu_custom_call.1} parent=5 // pred_check_branch
        %755 = sbr.rel (%p753) target = $region60
      $region59: #{tpu_custom_call.1} parent=5 // pred_region
        %s756 = ssub.s32 %s16, 2
        // Predicated region
        $region61: #{tpu_custom_call.1} parent=59 // pred_check
          %p757 = pneg %p174
        $region62: #{tpu_custom_call.1} parent=59 // pred_check_branch
          %759 = sbr.rel (%p757) target = $region64
        $region63: #{tpu_custom_call.1} parent=59 // pred_region
          %p760 = scmp.lt.s32.totalorder %s27, 1
          %s761 = scalar_select %p760, %s27, 1
          %s762 = smul.addr %s761, 4
          %s763 = smul.addr %s762, 8
          %s764 = scalar_lea.vmem %s5, %s763
        $region64: #{tpu_custom_call.1} parent=59 // pred_fallthru
          _
        // Predicated region
        $region65: #{tpu_custom_call.1} parent=59 // pred_check
          %p765 = pneg %p200
        $region66: #{tpu_custom_call.1} parent=59 // pred_check_branch
          %767 = sbr.rel (%p765) target = $region68
        $region67: #{tpu_custom_call.1} parent=59 // pred_region
          %s768 = sand.u32 %s185, 1
          %s769 = scalar_lea.sflag [#allocation5], %s768
          %s770 = sand.u32 %s185, 1
          %s771 = scalar_lea.vmem [#allocation4], %s770
          %772 = dma.done %s769, 16
        $region68: #{tpu_custom_call.1} parent=59 // pred_fallthru
          _
      $region60: #{tpu_custom_call.1} parent=5 // pred_fallthru
        _
    $region6: #{tpu_custom_call.1} parent=1 // loop_footer
      %s20 = sadd.s32 1, %s16
    $region7: #{tpu_custom_call.1} parent=1 // loop_footer_branch
      %15 = sbr.rel target = $region3
    $region8: #{tpu_custom_call.1} parent=1 // loop_exit
      _
    %773 = vsyncpa [#allocation5], 1
    %s774 = scalar_lea.sflag [#allocation5], 1
    %775 = vsyncpa %s774, 1

</llo_original>
